<compile_context>
chip_gen: v7x
topology: tpu7x:2x2x1
jax: 0.10.0
libtpu: 0.0.40
codegen_flags: <defaults>
</compile_context>

<pallas_src>
import functools

import jax
import jax.numpy as jnp
from jax import lax
from jax.experimental import pallas as pl
from jax.experimental.pallas import tpu as pltpu


def _spatial_transformer_kernel(src_ref, coord_ref, out_ref, *,
                                S, K, TP, use_bf16_matmul):
    # src_ref  : (1, C*S, K)   whole (possibly transposed) image, one batch elem
    # coord_ref: (1, 2, TP)    absolute sampling coords for this pixel tile
    #                          channel 0 -> gather axis (K), channel 1 -> combine axis (S)
    # out_ref  : (1, C, TP)
    C = out_ref.shape[1]

    ck = coord_ref[0, 0:1, :]          # (1, TP) coordinate along the K axis
    cs = coord_ref[0, 1:2, :]          # (1, TP) coordinate along the S axis

    # Hat-function bilinear weights (closed form, no compares/selects).
    k_iota = lax.broadcasted_iota(jnp.int32, (K, TP), 0).astype(jnp.float32)
    B = jnp.maximum(0.0, 1.0 - jnp.abs(k_iota - ck))         # (K, TP)
    s_iota = lax.broadcasted_iota(jnp.int32, (S, TP), 0).astype(jnp.float32)
    A = jnp.maximum(0.0, 1.0 - jnp.abs(s_iota - cs))         # (S, TP)

    src = src_ref[0]                                         # (C*S, K), native dtype
    if use_bf16_matmul:
        src = src.astype(jnp.bfloat16)
        Bm = B.astype(jnp.bfloat16)
    elif src.dtype != B.dtype:
        Bm = B.astype(src.dtype)
    else:
        Bm = B

    # Stage 1 (MXU): gather along K for every (c, s) row at once.
    tmp = jnp.dot(src, Bm, preferred_element_type=jnp.float32)   # (C*S, TP)

    # Stage 2 (VPU): weighted combine of the two relevant rows per channel.
    tmp3 = tmp.reshape(C, S, TP)                             # free: S % 8 == 0
    out = jnp.sum(tmp3 * A[None, :, :], axis=1)              # (C, TP)
    out_ref[0] = out.astype(out_ref.dtype)


def _round_up(x, m):
    return -(-x // m) * m


def _tile_footprint_bytes(C, S_pad, K, TP, *, src_itemsize, out_itemsize, use_bf16):
    """Approximate per-grid-step VMEM footprint of the kernel."""
    mat_item = 2 if use_bf16 else 4
    src_b = 2 * C * S_pad * K * src_itemsize        # double-buffered image block
    coord_b = 2 * 2 * TP * 4                        # double-buffered coords block
    out_b = 2 * C * TP * out_itemsize               # double-buffered output block
    op_b = K * TP * mat_item + S_pad * TP * 4       # B + A operators
    tmp_b = 2 * C * S_pad * TP * 4                  # tmp + broadcast product
    return src_b + coord_b + out_b + op_b + tmp_b


def spatial_transformer(src, flow, *, use_bf16_matmul=False, tp_cap=None):
    """Equivalent of SpatialTransformer(size=(H, W), mode='bilinear')(src, flow)."""
    N, C, H, W = src.shape
    assert flow.shape == (N, 2, H, W)
    flow = flow.astype(jnp.float32)

    # Absolute sampling coordinates (align_corners=True normalization cancels).
    row = jnp.arange(H, dtype=jnp.float32)[None, :, None]
    col = jnp.arange(W, dtype=jnp.float32)[None, None, :]
    y = row + flow[:, 0]                                     # (N, H, W)
    x = col + flow[:, 1]                                     # (N, H, W)

    # MXU contraction axis K = max(H, W); VPU combine axis S = min(H, W).
    if W >= H:
        K, S = W, H
        src_g = src                                          # (N, C, S, K)
        coord_k, coord_s = x, y
    else:
        K, S = H, W
        src_g = jnp.swapaxes(src, 2, 3)                      # (N, C, S, K)
        coord_k, coord_s = y, x

    # Pad combine axis to a multiple of 8: keeps the in-kernel reshape free;
    # padded rows are all-zero so they never contribute to the output.
    S_pad = _round_up(S, 8)
    if S_pad != S:
        src_g = jnp.pad(src_g, ((0, 0), (0, 0), (0, S_pad - S), (0, 0)))
    src_f = src_g.reshape(N, C * S_pad, K)

    # Pad the output-pixel axis to a multiple of 128 (lane-dense stores);
    # padded pixels sample out of range (-2.0) -> zero, and are sliced away.
    HW = H * W
    HW_pad = _round_up(HW, 128)
    coords = jnp.stack([coord_k.reshape(N, HW), coord_s.reshape(N, HW)], axis=1)
    if HW_pad != HW:
        coords = jnp.pad(coords, ((0, 0), (0, 0), (0, HW_pad - HW)),
                         constant_values=-2.0)

    # ---- tile / VMEM policy (generation-aware) -----------------------------
    try:
        phys_vmem = pltpu.get_tpu_info().vmem_capacity_bytes
    except Exception:
        phys_vmem = 64 << 20                                 # conservative (v7x)
    if tp_cap is None:
        tp_cap = 512 if phys_vmem <= (64 << 20) else 2048    # v7x vs v5e/v6e
    budget = int(phys_vmem * 0.7)
    # When N == 1, keep >= 2 pixel tiles so both v7x TensorCores get work.
    max_tp = HW_pad if N >= 2 else max(128, HW_pad // 2)

    itemsize = jnp.dtype(src.dtype).itemsize
    foot = functools.partial(_tile_footprint_bytes, C, S_pad, K,
                             src_itemsize=itemsize, out_itemsize=itemsize,
                             use_bf16=use_bf16_matmul)
    TP = 128
    t = 128
    while t <= min(HW_pad, tp_cap, max_tp):
        if HW_pad % t == 0 and foot(t) <= budget:
            TP = t
        t += 128
    n_pt = HW_pad // TP
    vmem_limit = int(min(max(foot(TP) + (8 << 20), 32 << 20),
                         phys_vmem - (4 << 20)))

    kernel = functools.partial(_spatial_transformer_kernel,
                               S=S_pad, K=K, TP=TP,
                               use_bf16_matmul=use_bf16_matmul)
    out = pl.pallas_call(
        kernel,
        out_shape=jax.ShapeDtypeStruct((N, C, HW_pad), src.dtype),
        grid_spec=pltpu.PrefetchScalarGridSpec(
            num_scalar_prefetch=0,
            grid=(N, n_pt),
            in_specs=[
                # src block index only changes with the slow n axis; VMEM for
                # its double buffer is already accounted for in foot(TP).
                pl.BlockSpec((1, C * S_pad, K), lambda n, p: (n, 0, 0)),
                pl.BlockSpec((1, 2, TP), lambda n, p: (n, 0, p)),
            ],
            out_specs=pl.BlockSpec((1, C, TP), lambda n, p: (n, 0, p)),
        ),
        compiler_params=pltpu.CompilerParams(
            dimension_semantics=("parallel", "parallel"),
            vmem_limit_bytes=vmem_limit),
    )(src_f, coords)
    return out[:, :, :HW].reshape(N, C, H, W)


def _reference(src, flow):
    """Pure-JAX reference of the same forward pass (for verification)."""
    N, C, H, W = src.shape
    row = jnp.arange(H, dtype=jnp.float32)[None, :, None]
    col = jnp.arange(W, dtype=jnp.float32)[None, None, :]
    y = row + flow[:, 0]
    x = col + flow[:, 1]
    y0 = jnp.floor(y)
    x0 = jnp.floor(x)
    wy = y - y0
    wx = x - x0

    n_idx = jnp.arange(N)[:, None, None, None]
    c_idx = jnp.arange(C)[None, :, None, None]

    def tap(yi, xi):
        valid = (yi >= 0) & (yi <= H - 1) & (xi >= 0) & (xi <= W - 1)
        yc = jnp.clip(yi, 0, H - 1).astype(jnp.int32)
        xc = jnp.clip(xi, 0, W - 1).astype(jnp.int32)
        vals = src[n_idx, c_idx, yc[:, None], xc[:, None]]
        return vals * valid[:, None].astype(src.dtype)

    out = (tap(y0, x0) * ((1 - wy) * (1 - wx))[:, None]
           + tap(y0, x0 + 1) * ((1 - wy) * wx)[:, None]
           + tap(y0 + 1, x0) * (wy * (1 - wx))[:, None]
           + tap(y0 + 1, x0 + 1) * (wy * wx)[:, None])
    return out


if __name__ == "__main__":
    key = jax.random.PRNGKey(0)
    k1, k2 = jax.random.split(key)
    N, C, H, W = 2, 4, 16, 16

    src = jax.random.normal(k1, (N, C, H, W), dtype=jnp.float32)
    # displacement field (in pixels); includes out-of-bound samples
    flow = 2.5 * jax.random.normal(k2, (N, 2, H, W), dtype=jnp.float32)

    out = jax.block_until_ready(spatial_transformer(src, flow))
    ref = jax.block_until_ready(_reference(src, flow))

    assert out.shape == (N, C, H, W)
    assert jnp.allclose(out, ref, atol=1e-5, rtol=1e-5), \
        f"max abs err {jnp.max(jnp.abs(out - ref))}"

    print("KERNEL_OK")
</pallas_src>

<mosaic_0001>
module attributes {stable_mosaic.version = 11 : i64} {
  func.func @_spatial_transformer_kernel(%arg0: i32, %arg1: i32, %arg2: memref<1x64x16xf32, #tpu.memory_space<vmem>>, %arg3: memref<1x2x256xf32, #tpu.memory_space<vmem>>, %arg4: memref<1x4x256xf32, #tpu.memory_space<vmem>>) attributes {dimension_semantics = [#tpu.dimension_semantics<parallel>, #tpu.dimension_semantics<parallel>], iteration_bounds = array<i64: 2, 1>, scalar_prefetch = 0 : i64, scratch_operands = 0 : i64, tpu.core_type = #tpu.core_type<tc>, window_params = [{transform_indices = @transform_0, window_bounds = array<i64: 1, 64, 16>}, {transform_indices = @transform_1, window_bounds = array<i64: 1, 2, 256>}, {transform_indices = @transform_2, window_bounds = array<i64: 1, 4, 256>}]} {
    %c0 = arith.constant 0 : index
    %c0_0 = arith.constant 0 : index
    %c0_1 = arith.constant 0 : index
    %0 = vector.load %arg3[%c0, %c0_0, %c0_1] : memref<1x2x256xf32, #tpu.memory_space<vmem>>, vector<1x1x256xf32>
    %1 = vector.shape_cast %0 : vector<1x1x256xf32> to vector<1x256xf32>
    %c0_2 = arith.constant 0 : index
    %c1 = arith.constant 1 : index
    %c0_3 = arith.constant 0 : index
    %2 = vector.load %arg3[%c0_2, %c1, %c0_3] : memref<1x2x256xf32, #tpu.memory_space<vmem>>, vector<1x1x256xf32>
    %3 = vector.shape_cast %2 : vector<1x1x256xf32> to vector<1x256xf32>
    %4 = tpu.iota {dimensions = array<i32: 0>} : vector<16x256xi32>
    %5 = arith.sitofp %4 : vector<16x256xi32> to vector<16x256xf32>
    %6 = vector.broadcast %1 : vector<1x256xf32> to vector<16x256xf32>
    %7 = arith.subf %5, %6 : vector<16x256xf32>
    %8 = math.absf %7 : vector<16x256xf32>
    %cst = arith.constant 1.000000e+00 : f32
    %9 = vector.broadcast %cst : f32 to vector<16x256xf32>
    %10 = arith.subf %9, %8 : vector<16x256xf32>
    %cst_4 = arith.constant 0.000000e+00 : f32
    %11 = vector.broadcast %cst_4 : f32 to vector<16x256xf32>
    %12 = arith.maximumf %11, %10 : vector<16x256xf32>
    %13 = tpu.iota {dimensions = array<i32: 0>} : vector<16x256xi32>
    %14 = arith.sitofp %13 : vector<16x256xi32> to vector<16x256xf32>
    %15 = vector.broadcast %3 : vector<1x256xf32> to vector<16x256xf32>
    %16 = arith.subf %14, %15 : vector<16x256xf32>
    %17 = math.absf %16 : vector<16x256xf32>
    %cst_5 = arith.constant 1.000000e+00 : f32
    %18 = vector.broadcast %cst_5 : f32 to vector<16x256xf32>
    %19 = arith.subf %18, %17 : vector<16x256xf32>
    %cst_6 = arith.constant 0.000000e+00 : f32
    %20 = vector.broadcast %cst_6 : f32 to vector<16x256xf32>
    %21 = arith.maximumf %20, %19 : vector<16x256xf32>
    %c0_7 = arith.constant 0 : index
    %c0_8 = arith.constant 0 : index
    %c0_9 = arith.constant 0 : index
    %22 = vector.load %arg2[%c0_7, %c0_8, %c0_9] : memref<1x64x16xf32, #tpu.memory_space<vmem>>, vector<1x64x16xf32>
    %23 = vector.shape_cast %22 : vector<1x64x16xf32> to vector<64x16xf32>
    %cst_10 = arith.constant dense<0.000000e+00> : vector<64x256xf32>
    %24 = tpu.matmul %23, %12, %cst_10 {dimension_numbers = #tpu.dot_dimension_numbers<[1], [0], [0], [1], [0, 0, 1, 1], [], []>} : vector<64x16xf32>, vector<16x256xf32>, vector<64x256xf32> -> vector<64x256xf32>
    %25 = vector.shape_cast %24 : vector<64x256xf32> to vector<4x16x256xf32>
    %26 = vector.shape_cast %21 : vector<16x256xf32> to vector<1x16x256xf32>
    %27 = vector.broadcast %26 : vector<1x16x256xf32> to vector<4x16x256xf32>
    %28 = arith.mulf %25, %27 : vector<4x16x256xf32>
    %cst_11 = arith.constant dense<0.000000e+00> : vector<4x256xf32>
    %29 = vector.multi_reduction <add>, %28, %cst_11 [1] : vector<4x16x256xf32> to vector<4x256xf32>
    %c0_12 = arith.constant 0 : index
    %c0_13 = arith.constant 0 : index
    %c0_14 = arith.constant 0 : index
    %30 = vector.load %arg4[%c0_12, %c0_13, %c0_14] : memref<1x4x256xf32, #tpu.memory_space<vmem>>, vector<1x4x256xf32>
    %31 = vector.shape_cast %30 : vector<1x4x256xf32> to vector<4x256xf32>
    %32 = vector.shape_cast %29 : vector<4x256xf32> to vector<1x4x256xf32>
    tpu.vector_store %arg4[%c0_12, %c0_13, %c0_14], %32 {strides = array<i32>} : memref<1x4x256xf32, #tpu.memory_space<vmem>>, vector<1x4x256xf32>,
    return
  }
  func.func @transform_0(%arg0: i32, %arg1: i32) -> (i32, i32, i32) {
    %c0_i32 = arith.constant 0 : i32
    %c0_i32_0 = arith.constant 0 : i32
    %c0_i32_1 = arith.constant 0 : i32
    return %arg0, %c0_i32, %c0_i32_0 : i32, i32, i32
  }
  func.func @transform_1(%arg0: i32, %arg1: i32) -> (i32, i32, i32) {
    %c0_i32 = arith.constant 0 : i32
    %c0_i32_0 = arith.constant 0 : i32
    return %arg0, %c0_i32, %arg1 : i32, i32, i32
  }
  func.func @transform_2(%arg0: i32, %arg1: i32) -> (i32, i32, i32) {
    %c0_i32 = arith.constant 0 : i32
    %c0_i32_0 = arith.constant 0 : i32
    return %arg0, %c0_i32, %arg1 : i32, i32, i32
  }
}

</mosaic_0001>

<llo_original>
// kernel: tpu_custom_call.1
$region0: #{tpu_custom_call.1}
  #allocation0 [shape = 'u32[]', space=smem, size = 0x4, offset = 0x4, fixed_abs, tag = 'smem constant byte address 0x4 - core index']
  #allocation1 [shape = 'u32[144,128]{1,0:T(1,128)}', space=vmem, size = 0x12000, scoped, tag = 'internal scratch']
  %s0 = inlined_call_operand.vmem [shape: f32[2,64,16], index: 0, kind: input, shape index: {}]
  %s1 = inlined_call_operand.vmem [shape: f32[2,2,256], index: 1, kind: input, shape index: {}]
  %s2 = inlined_call_operand.hbm [shape: f32[2,4,256], index: 2, kind: output, shape index: {}]
  %s3 = sld [smem:[#allocation0]]
  $region41: #{tpu_custom_call.1} parent=0
    _
  %s5 = ssub.s32 1, %s3
  %s6 = scalar_select 0, %s5, %s3
  $region1: #{tpu_custom_call.1} parent=0
    #allocation2 [shape = 'u8[8192]{0}', space=vmem, size = 0x2000, scoped, tag = 'output window, operand 0']
    #allocation3 [shape = 's32[2]{0}', space=sflag, size = 0x8, scoped, tag = 'scoped memory for tpu_custom_call.1']
    %7 = vsyncpa [#allocation3], 0
    %s8 = scalar_lea.sflag [#allocation3], 1
    %9 = vsyncpa %s8, 0
    loop: start=0, step=1, limit=4
    $region2: #{tpu_custom_call.1} parent=1 // loop_pre_header
      _
    $region3: #{tpu_custom_call.1} parent=1 // loop_header
      %s11 = sphi 0, %s15
      %p12 = scmp.ge.s32.totalorder %s11, 4
      %s18 = sphi 0, %s30
      %s19 = sphi 0, %s26
      %s20 = sphi 0, %s18
      %s21 = sphi 0, %s19
      %s22 = sphi 0, %s20
      %s23 = sphi 0, %s21
      %s33 = sphi 0, %s35
      %s36 = sphi 0, %s33
      %s37 = sphi 0, %s36
      %s53 = sphi 0, %s37
      %s61 = sphi 0, %s63
      %s64 = sphi 0, %s61
      %s65 = sphi 0, %s64
      %s81 = sphi 0, %s65
      %s89 = sphi 0, %s91
      %s92 = sphi 0, %s89
      %s93 = sphi 0, %s92
      %s109 = sphi 0, %s93
    $region4: #{tpu_custom_call.1} parent=1 // loop_header_branch
      %14 = sbr.rel (%p12) target = $region8
    $region5: #{tpu_custom_call.1} parent=1 // loop_body
      %s16 = ssub.s32 %s11, 1
      %s17 = ssub.s32 %s11, 2
      %s24 = sadd.s32 1, %s19
      %p25 = scmp.ge.s32.totalorder %s24, 1
      %s26 = scalar_select %p25, 0, %s24
      %s27 = sadd.s32 1, %s18
      %s28 = scalar_select %p25, %s27, %s18
      %p29 = scmp.ge.s32.totalorder %s28, 2
      %s30 = scalar_select %p29, 0, %s28
      %s31 = ssub.s32 %s18, %s30
      %p32 = scmp.eq.s32.totalorder %s31, 0
      %s34 = sadd.s32 %s33, 1
      %s35 = scalar_select %p32, %s33, %s34
      %p38 = pneg %p32
      %p39 = scmp.eq.s32.totalorder %s11, 1
      %p40 = por %p38, %p39
      %p41 = scmp.ne.s32.totalorder %s33, %s36
      %p42 = scmp.eq.s32.totalorder %s11, 0
      %p43 = por %p41, %p42
      %p44 = scmp.ne.s32.totalorder %s33, %s36
      %p45 = scmp.eq.s32.totalorder %s16, 1
      %p46 = por %p44, %p45
      %p47 = scmp.ne.s32.totalorder %s36, %s37
      %p48 = scmp.eq.s32.totalorder %s16, 0
      %p49 = por %p47, %p48
      %p50 = scmp.ne.s32.totalorder %s36, %s37
      %p51 = scmp.eq.s32.totalorder %s17, 1
      %p52 = por %p50, %p51
      %p54 = scmp.ne.s32.totalorder %s37, %s53
      %p55 = scmp.eq.s32.totalorder %s17, 0
      %p56 = por %p54, %p55
      %s57 = ssub.s32 %s18, %s30
      %s58 = ssub.s32 %s19, %s26
      %s59 = sor.u32 %s57, %s58
      %p60 = scmp.eq.s32.totalorder %s59, 0
      %s62 = sadd.s32 %s61, 1
      %s63 = scalar_select %p60, %s61, %s62
      %p66 = pneg %p60
      %p67 = scmp.eq.s32.totalorder %s11, 1
      %p68 = por %p66, %p67
      %p69 = scmp.ne.s32.totalorder %s61, %s64
      %p70 = scmp.eq.s32.totalorder %s11, 0
      %p71 = por %p69, %p70
      %p72 = scmp.ne.s32.totalorder %s61, %s64
      %p73 = scmp.eq.s32.totalorder %s16, 1
      %p74 = por %p72, %p73
      %p75 = scmp.ne.s32.totalorder %s64, %s65
      %p76 = scmp.eq.s32.totalorder %s16, 0
      %p77 = por %p75, %p76
      %p78 = scmp.ne.s32.totalorder %s64, %s65
      %p79 = scmp.eq.s32.totalorder %s17, 1
      %p80 = por %p78, %p79
      %p82 = scmp.ne.s32.totalorder %s65, %s81
      %p83 = scmp.eq.s32.totalorder %s17, 0
      %p84 = por %p82, %p83
      %s85 = ssub.s32 %s18, %s30
      %s86 = ssub.s32 %s19, %s26
      %s87 = sor.u32 %s85, %s86
      %p88 = scmp.eq.s32.totalorder %s87, 0
      %s90 = sadd.s32 %s89, 1
      %s91 = scalar_select %p88, %s89, %s90
      %p94 = pneg %p88
      %p95 = scmp.eq.s32.totalorder %s11, 1
      %p96 = por %p94, %p95
      %p97 = scmp.ne.s32.totalorder %s89, %s92
      %p98 = scmp.eq.s32.totalorder %s11, 0
      %p99 = por %p97, %p98
      %p100 = scmp.ne.s32.totalorder %s89, %s92
      %p101 = scmp.eq.s32.totalorder %s16, 1
      %p102 = por %p100, %p101
      %p103 = scmp.ne.s32.totalorder %s92, %s93
      %p104 = scmp.eq.s32.totalorder %s16, 0
      %p105 = por %p103, %p104
      %p106 = scmp.ne.s32.totalorder %s92, %s93
      %p107 = scmp.eq.s32.totalorder %s17, 1
      %p108 = por %p106, %p107
      %p110 = scmp.ne.s32.totalorder %s93, %s109
      %p111 = scmp.eq.s32.totalorder %s17, 0
      %p112 = por %p110, %p111
      %p113 = scmp.le.s32.totalorder 1, %s11
      %p114 = scmp.lt.s32.totalorder %s11, 3
      %p115 = pnand %p113, %p114
      %p116 = pneg %p115
      // Predicated region
      $region9: #{tpu_custom_call.1} parent=5 // pred_check
        _
      $region10: #{tpu_custom_call.1} parent=5 // pred_check_branch
        %118 = sbr.rel (%p115) target = $region12
      $region11: #{tpu_custom_call.1} parent=5 // pred_region
        %s119 = ssub.s32 %s11, 1
      $region12: #{tpu_custom_call.1} parent=5 // pred_fallthru
        _
      %p120 = scmp.lt.s32.totalorder %s11, 2
      // Predicated region
      $region13: #{tpu_custom_call.1} parent=5 // pred_check
        %p121 = pneg %p120
      $region14: #{tpu_custom_call.1} parent=5 // pred_check_branch
        %123 = sbr.rel (%p121) target = $region16
      $region15: #{tpu_custom_call.1} parent=5 // pred_region
        // Predicated region
        $region17: #{tpu_custom_call.1} parent=15 // pred_check
          %p124 = pneg %p43
        $region18: #{tpu_custom_call.1} parent=15 // pred_check_branch
          %126 = sbr.rel (%p124) target = $region20
        $region19: #{tpu_custom_call.1} parent=15 // pred_region
          %p127 = scmp.lt.s32.totalorder %s18, 1
          %s128 = scalar_select %p127, %s18, 1
          %s129 = smul.addr %s128, 8
          %s130 = smul.addr %s129, 8
          %s131 = scalar_lea.vmem %s0, %s130
        $region20: #{tpu_custom_call.1} parent=15 // pred_fallthru
          _
        // Predicated region
        $region21: #{tpu_custom_call.1} parent=15 // pred_check
          %p132 = pneg %p71
        $region22: #{tpu_custom_call.1} parent=15 // pred_check_branch
          %134 = sbr.rel (%p132) target = $region24
        $region23: #{tpu_custom_call.1} parent=15 // pred_region
          %s135 = smul.u32 2, %s19
          %p136 = scmp.lt.s32.totalorder %s18, 1
          %s137 = scalar_select %p136, %s18, 1
          %p138 = scmp.lt.s32.totalorder %s135, 1
          %s139 = scalar_select %p138, %s135, 1
          %s140 = smul.addr %s137, 2
          %s141 = sadd.s32 %s139, %s140
          %s142 = smul.addr %s141, 2
          %s143 = scalar_lea.vmem %s1, %s142
          %s144 = smul.u32 2, %s19
        $region24: #{tpu_custom_call.1} parent=15 // pred_fallthru
          _
      $region16: #{tpu_custom_call.1} parent=5 // pred_fallthru
        _
      %p145 = scmp.le.s32.totalorder 1, %s11
      %p146 = scmp.lt.s32.totalorder %s11, 3
      %p147 = pnand %p145, %p146
      %p148 = pneg %p147
      // Predicated region
      $region25: #{tpu_custom_call.1} parent=5 // pred_check
        _
      $region26: #{tpu_custom_call.1} parent=5 // pred_check_branch
        %150 = sbr.rel (%p147) target = $region28
      $region27: #{tpu_custom_call.1} parent=5 // pred_region
        %s151 = ssub.s32 %s11, 1
        %p152 = scmp.lt.s32.totalorder %s20, 1
        %s153 = scalar_select %p152, %s20, 1
        %s154 = smul.addr %s153, 8
        %s155 = smul.addr %s154, 8
        %s156 = scalar_lea.vmem %s0, %s155
        %p157 = pneg %p49
        %p158 = pneg %p46
        %s159 = smul.u32 2, %s21
        %p160 = scmp.lt.s32.totalorder %s20, 1
        %s161 = scalar_select %p160, %s20, 1
        %p162 = scmp.lt.s32.totalorder %s159, 1
        %s163 = scalar_select %p162, %s159, 1
        %s164 = smul.addr %s161, 2
        %s165 = sadd.s32 %s163, %s164
        %s166 = smul.addr %s165, 2
        %s167 = scalar_lea.vmem %s1, %s166
        %p168 = pneg %p77
        %p169 = pneg %p74
        %p170 = pneg %p105
        %p171 = pneg %p102
        %s172 = sand.u32 %s92, 1
        %s173 = scalar_lea.sflag [#allocation3], %s172
        %s174 = sand.u32 %s92, 1
        %s175 = smul.addr %s174, 8
        %s176 = scalar_lea.vmem [#allocation2], %s175
        %p177 = scmp.lt.s32.totalorder %s20, 1
        %s178 = scalar_select %p177, %s20, 1
        %s179 = smul.addr %s178, 8
        %s180 = smul.addr %s179, 8
        %s181 = scalar_lea.vmem %s0, %s180
        %s182 = smul.u32 2, %s21
        %p183 = scmp.lt.s32.totalorder %s20, 1
        %s184 = scalar_select %p183, %s20, 1
        %p185 = scmp.lt.s32.totalorder %s182, 1
        %s186 = scalar_select %p185, %s182, 1
        %s187 = smul.addr %s184, 2
        %s188 = sadd.s32 %s186, %s187
        %s189 = smul.addr %s188, 2
        %s190 = scalar_lea.vmem %s1, %s189
        %s191 = smul.u32 2, %s21
        %s192 = smul.u32 2, %s21
        %v193 = vld [vmem:[%s190] ss:$2 sm:$0x3]
        %s194 = scalar_lea.vmem %s190, 1
        %v195 = vld [vmem:[%s194] ss:$2 sm:$0x3]
        %v196 = vlaneseq
        %v197 = vshrl.u32 %v196, 7
        %v198 = vadd.s32 %v197, 8
        %v199 = vcvt.s32.f32 %v197
        %v200 = vcvt.s32.f32 %v198
        %v202 = vlaneseq
        %v203 = vshrl.u32 %v202, 7
        %v204 = vsub.s32 0, %v203
        %v205 = vrot.slane %v193, %v204
        %v206 = vlaneseq
        %v207 = vshrl.u32 %v206, 7
        %v208 = vsub.s32 1, %v207
        %v209 = vrot.slane %v193, %v208
        %v212 = vsub.f32 %v199, %v205
        %v213 = vsub.f32 %v199, %v209
        %v214 = vsub.f32 %v200, %v205
        %v215 = vsub.f32 %v200, %v209
        %v216 = vand.u32 2147483647, %v212
        %v217 = vand.u32 2147483647, %v213
        %v218 = vand.u32 2147483647, %v214
        %v219 = vand.u32 2147483647, %v215
        %v220 = vsub.f32 1.0, %v216
        %v221 = vsub.f32 1.0, %v217
        %v222 = vsub.f32 1.0, %v218
        %v223 = vsub.f32 1.0, %v219
        %v224 = vmax.f32 %v220, 0.0
        %v225 = vmax.f32 %v221, 0.0
        %v226 = vmax.f32 %v222, 0.0
        %v227 = vmax.f32 %v223, 0.0
        %v229 = vlaneseq
        %v230 = vshrl.u32 %v229, 7
        %v231 = vsub.s32 0, %v230
        %v232 = vrot.slane %v195, %v231
        %v233 = vlaneseq
        %v234 = vshrl.u32 %v233, 7
        %v235 = vsub.s32 1, %v234
        %v236 = vrot.slane %v195, %v235
        %v239 = vsub.f32 %v199, %v232
        %v240 = vsub.f32 %v199, %v236
        %v241 = vsub.f32 %v200, %v232
        %v242 = vsub.f32 %v200, %v236
        %v243 = vand.u32 2147483647, %v239
        %v244 = vand.u32 2147483647, %v240
        %v245 = vand.u32 2147483647, %v241
        %v246 = vand.u32 2147483647, %v242
        %v247 = vsub.f32 1.0, %v243
        %v248 = vsub.f32 1.0, %v244
        %v249 = vsub.f32 1.0, %v245
        %v250 = vsub.f32 1.0, %v246
        %v251 = vmax.f32 %v247, 0.0
        %v252 = vmax.f32 %v248, 0.0
        %v253 = vmax.f32 %v249, 0.0
        %v254 = vmax.f32 %v250, 0.0
        %v255 = vld [vmem:[%s181] sm:$0xff]
        %v256 = vld [vmem:[%s181 + $0x8] sm:$0xff]
        %v257 = vld [vmem:[%s181 + $0x10] sm:$0xff]
        %v258 = vld [vmem:[%s181 + $0x18] sm:$0xff]
        %v259 = vld [vmem:[%s181 + $0x20] sm:$0xff]
        %v260 = vld [vmem:[%s181 + $0x28] sm:$0xff]
        %v261 = vld [vmem:[%s181 + $0x30] sm:$0xff]
        %v262 = vld [vmem:[%s181 + $0x38] sm:$0xff]
        %vm263 = vcmask 130048
        %v265 = vsel %vm263, %v255, 0
        %v268 = vsel %vm263, %v256, 0
        %v271 = vsel %vm263, %v257, 0
        %v274 = vsel %vm263, %v258, 0
        %v277 = vsel %vm263, %v259, 0
        %v280 = vsel %vm263, %v260, 0
        %v283 = vsel %vm263, %v261, 0
        %v286 = vsel %vm263, %v262, 0
        %288 = vmatprep.subr.mxu0 %v225
        %289 = vmatpush1.msra.mxu0 %v224
        %290 = vmatprep.subr.mxu0 %v227
        %291 = vmatpush1.msra.mxu0 %v226
        %292 = vmatprep.subr.mxu0 0.0
        %293 = vmatpush1.msra.mxu0 0.0
        %294 = vmatprep.subr.mxu0 0.0
        %295 = vmatpush1.msra.mxu0 0.0
        %296 = vmatprep.subr.mxu0 0.0
        %297 = vmatpush1.msra.mxu0 0.0
        %298 = vmatprep.subr.mxu0 0.0
        %299 = vmatpush1.msra.mxu0 0.0
        %300 = vmatprep.subr.mxu0 0.0
        %301 = vmatpush1.msra.mxu0 0.0
        %302 = vmatprep.subr.mxu0 0.0
        %303 = vmatpush1.msra.mxu0 0.0
        %304 = vmatprep.subr.mxu0 0.0
        %305 = vmatpush1.msra.mxu0 0.0
        %306 = vmatprep.subr.mxu0 0.0
        %307 = vmatpush1.msra.mxu0 0.0
        %308 = vmatprep.subr.mxu0 0.0
        %309 = vmatpush1.msra.mxu0 0.0
        %310 = vmatprep.subr.mxu0 0.0
        %311 = vmatpush1.msra.mxu0 0.0
        %312 = vmatprep.subr.mxu0 0.0
        %313 = vmatpush1.msra.mxu0 0.0
        %314 = vmatprep.subr.mxu0 0.0
        %315 = vmatpush1.msra.mxu0 0.0
        %316 = vmatprep.subr.mxu0 0.0
        %317 = vmatpush1.msra.mxu0 0.0
        %318 = vmatprep.subr.mxu0 0.0
        %319 = vmatpush1.msra.mxu0 0.0
        %320 = vmatprep.subr.mxu0 0.0
        %321 = vmatpush1.msra.mxu0 0.0
        %322 = vmatprep.subr.mxu0 0.0
        %323 = vmatpush1.msra.mxu0 0.0
        %324 = vmatprep.subr.mxu0 0.0
        %325 = vmatpush1.msra.mxu0 0.0
        %326 = vmatprep.subr.mxu0 0.0
        %327 = vmatpush1.msra.mxu0 0.0
        %328 = vmatprep.subr.mxu0 0.0
        %329 = vmatpush1.msra.mxu0 0.0
        %330 = vmatprep.subr.mxu0 0.0
        %331 = vmatpush1.msra.mxu0 0.0
        %332 = vmatprep.subr.mxu0 0.0
        %333 = vmatpush1.msra.mxu0 0.0
        %334 = vmatprep.subr.mxu0 0.0
        %335 = vmatpush1.msra.mxu0 0.0
        %336 = vmatprep.subr.mxu0 0.0
        %337 = vmatpush1.msra.mxu0 0.0
        %338 = vmatprep.subr.mxu0 0.0
        %339 = vmatpush1.msra.mxu0 0.0
        %340 = vmatprep.subr.mxu0 0.0
        %341 = vmatpush1.msra.mxu0 0.0
        %342 = vmatprep.subr.mxu0 0.0
        %343 = vmatpush1.msra.mxu0 0.0
        %344 = vmatprep.subr.mxu0 0.0
        %345 = vmatpush1.msra.mxu0 0.0
        %346 = vmatprep.subr.mxu0 0.0
        %347 = vmatpush1.msra.mxu0 0.0
        %348 = vmatprep.subr.mxu0 0.0
        %349 = vmatpush1.msra.mxu0 0.0
        %350 = vmatprep.subr.mxu0 0.0
        %351 = vmatpush1.msra.mxu0 0.0
        %352 = vmatprep.mubr.f32.mxu0 0.0
        %353 = vmatmul.mubr.f32.gmra.mrb[0].mxu0 %v265
        %v354 = vpop.f32.mrb[0].mxu0
        %v355 = vadd.f32 0.0, %v354
        %v356 = vpop.f32.mrb[0].mxu0
        %v357 = vadd.f32 0.0, %v356
        %358 = vmatprep.mubr.f32.mxu0 0.0
        %359 = vmatmul.mubr.f32.gmra.mrb[0].mxu0 %v268
        %v360 = vpop.f32.mrb[0].mxu0
        %v361 = vadd.f32 0.0, %v360
        %v362 = vpop.f32.mrb[0].mxu0
        %v363 = vadd.f32 0.0, %v362
        %364 = vmatprep.mubr.f32.mxu0 0.0
        %365 = vmatmul.mubr.f32.gmra.mrb[0].mxu0 %v271
        %v366 = vpop.f32.mrb[0].mxu0
        %v367 = vadd.f32 0.0, %v366
        %v368 = vpop.f32.mrb[0].mxu0
        %v369 = vadd.f32 0.0, %v368
        %370 = vmatprep.mubr.f32.mxu0 0.0
        %371 = vmatmul.mubr.f32.gmra.mrb[0].mxu0 %v274
        %v372 = vpop.f32.mrb[0].mxu0
        %v373 = vadd.f32 0.0, %v372
        %v374 = vpop.f32.mrb[0].mxu0
        %v375 = vadd.f32 0.0, %v374
        %376 = vmatprep.mubr.f32.mxu0 0.0
        %377 = vmatmul.mubr.f32.gmra.mrb[0].mxu0 %v277
        %v378 = vpop.f32.mrb[0].mxu0
        %v379 = vadd.f32 0.0, %v378
        %v380 = vpop.f32.mrb[0].mxu0
        %v381 = vadd.f32 0.0, %v380
        %382 = vmatprep.mubr.f32.mxu0 0.0
        %383 = vmatmul.mubr.f32.gmra.mrb[0].mxu0 %v280
        %v384 = vpop.f32.mrb[0].mxu0
        %v385 = vadd.f32 0.0, %v384
        %v386 = vpop.f32.mrb[0].mxu0
        %v387 = vadd.f32 0.0, %v386
        %388 = vmatprep.mubr.f32.mxu0 0.0
        %389 = vmatmul.mubr.f32.gmra.mrb[0].mxu0 %v283
        %v390 = vpop.f32.mrb[0].mxu0
        %v391 = vadd.f32 0.0, %v390
        %v392 = vpop.f32.mrb[0].mxu0
        %v393 = vadd.f32 0.0, %v392
        %394 = vmatprep.mubr.f32.mxu0 0.0
        %395 = vmatmul.mubr.f32.gmra.mrb[0].mxu0 %v286
        %v396 = vpop.f32.mrb[0].mxu0
        %v397 = vadd.f32 0.0, %v396
        %v398 = vpop.f32.mrb[0].mxu0
        %v399 = vadd.f32 0.0, %v398
        %400 = vdwg.mxu0
        %v401 = vmul.f32 %v355, %v251
        %v402 = vmul.f32 %v357, %v252
        %v403 = vmul.f32 %v361, %v253
        %v404 = vmul.f32 %v363, %v254
        %v405 = vmul.f32 %v367, %v251
        %v406 = vmul.f32 %v369, %v252
        %v407 = vmul.f32 %v373, %v253
        %v408 = vmul.f32 %v375, %v254
        %v409 = vmul.f32 %v379, %v251
        %v410 = vmul.f32 %v381, %v252
        %v411 = vmul.f32 %v385, %v253
        %v412 = vmul.f32 %v387, %v254
        %v413 = vmul.f32 %v391, %v251
        %v414 = vmul.f32 %v393, %v252
        %v415 = vmul.f32 %v397, %v253
        %v416 = vmul.f32 %v399, %v254
        %v417 = vadd.f32 %v401, %v403
        %v418 = vrot.slane %v417, 4
        %v419 = vadd.f32 %v417, %v418
        %v420 = vrot.slane %v419, 2
        %v421 = vadd.f32 %v419, %v420
        %v422 = vrot.slane %v421, 1
        %v423 = vadd.f32 %v421, %v422
        %v424 = vadd.f32 %v402, %v404
        %v425 = vrot.slane %v424, 4
        %v426 = vadd.f32 %v424, %v425
        %v427 = vrot.slane %v426, 2
        %v428 = vadd.f32 %v426, %v427
        %v429 = vrot.slane %v428, 1
        %v430 = vadd.f32 %v428, %v429
        %v431 = vadd.f32 %v405, %v407
        %v432 = vrot.slane %v431, 4
        %v433 = vadd.f32 %v431, %v432
        %v434 = vrot.slane %v433, 2
        %v435 = vadd.f32 %v433, %v434
        %v436 = vrot.slane %v435, 1
        %v437 = vadd.f32 %v435, %v436
        %v438 = vadd.f32 %v406, %v408
        %v439 = vrot.slane %v438, 4
        %v440 = vadd.f32 %v438, %v439
        %v441 = vrot.slane %v440, 2
        %v442 = vadd.f32 %v440, %v441
        %v443 = vrot.slane %v442, 1
        %v444 = vadd.f32 %v442, %v443
        %v445 = vadd.f32 %v409, %v411
        %v446 = vrot.slane %v445, 4
        %v447 = vadd.f32 %v445, %v446
        %v448 = vrot.slane %v447, 2
        %v449 = vadd.f32 %v447, %v448
        %v450 = vrot.slane %v449, 1
        %v451 = vadd.f32 %v449, %v450
        %v452 = vadd.f32 %v410, %v412
        %v453 = vrot.slane %v452, 4
        %v454 = vadd.f32 %v452, %v453
        %v455 = vrot.slane %v454, 2
        %v456 = vadd.f32 %v454, %v455
        %v457 = vrot.slane %v456, 1
        %v458 = vadd.f32 %v456, %v457
        %v459 = vadd.f32 %v413, %v415
        %v460 = vrot.slane %v459, 4
        %v461 = vadd.f32 %v459, %v460
        %v462 = vrot.slane %v461, 2
        %v463 = vadd.f32 %v461, %v462
        %v464 = vrot.slane %v463, 1
        %v465 = vadd.f32 %v463, %v464
        %v466 = vadd.f32 %v414, %v416
        %v467 = vrot.slane %v466, 4
        %v468 = vadd.f32 %v466, %v467
        %v469 = vrot.slane %v468, 2
        %v470 = vadd.f32 %v468, %v469
        %v471 = vrot.slane %v470, 1
        %v472 = vadd.f32 %v470, %v471
        %v481 = vcombine.low %v423, %v430
        %v482 = vcombine.low %v437, %v444
        %v483 = vcombine.low %v451, %v458
        %v484 = vcombine.low %v465, %v472
        %v485 = vrot.slane %v482, 7
        %vm486 = vcmask 1041409
        %v487 = vsel %vm486, %v485, %v481
        %vm488 = vcmask 1045509
        %v489 = vsel %vm488, %v485, %v487
        %v490 = vrot.slane %v483, 6
        %vm491 = vcmask 1042434
        %v492 = vsel %vm491, %v490, %v489
        %vm493 = vcmask 1046534
        %v494 = vsel %vm493, %v490, %v492
        %v495 = vrot.slane %v484, 5
        %vm496 = vcmask 1043459
        %v497 = vsel %vm496, %v495, %v494
        %vm498 = vcmask 1047559
        %v499 = vsel %vm498, %v495, %v497
        %501 = vst [vmem:[%s176] sm:$0xff] %v499
        %s502 = sand.u32 %s92, 1
        %s503 = scalar_lea.sflag [#allocation3], %s502
        %s504 = sand.u32 %s92, 1
        %s505 = smul.addr %s504, 8
        %s506 = scalar_lea.vmem [#allocation2], %s505
        // Predicated region
        $region29: #{tpu_custom_call.1} parent=27 // pred_check
          %p507 = pneg %p102
        $region30: #{tpu_custom_call.1} parent=27 // pred_check_branch
          %509 = sbr.rel (%p507) target = $region32
        $region31: #{tpu_custom_call.1} parent=27 // pred_region
          %s510 = smul.u32 2, %s21
          %s512 = ssub.s32 128, 128
          %513 = vsyncadd %s503, %s512
          %s514 = smul.addr %s20, 2
          %s515 = sadd.s32 %s510, %s514
          %s516 = smul.addr %s515, 64
          %s517 = scalar_lea.hbm %s2, %s516
          %s519 = sshll.u32 %s506, 4
          %s520 = int_to_ptr.vmem [resolvable:$true] %s519
          %522 = dma.vmem_to_hbm [thread:$0]  %s520, 128, %s517, %s503
        $region32: #{tpu_custom_call.1} parent=27 // pred_fallthru
          _
      $region28: #{tpu_custom_call.1} parent=5 // pred_fallthru
        _
      %p523 = scmp.le.s32.totalorder 2, %s11
      // Predicated region
      $region33: #{tpu_custom_call.1} parent=5 // pred_check
        %p524 = pneg %p523
      $region34: #{tpu_custom_call.1} parent=5 // pred_check_branch
        %526 = sbr.rel (%p524) target = $region36
      $region35: #{tpu_custom_call.1} parent=5 // pred_region
        %s527 = ssub.s32 %s11, 2
        // Predicated region
        $region37: #{tpu_custom_call.1} parent=35 // pred_check
          %p528 = pneg %p108
        $region38: #{tpu_custom_call.1} parent=35 // pred_check_branch
          %530 = sbr.rel (%p528) target = $region40
        $region39: #{tpu_custom_call.1} parent=35 // pred_region
          %s531 = sand.u32 %s93, 1
          %s532 = scalar_lea.sflag [#allocation3], %s531
          %s533 = sand.u32 %s93, 1
          %s534 = smul.addr %s533, 8
          %s535 = scalar_lea.vmem [#allocation2], %s534
          %536 = dma.done %s532, 128
        $region40: #{tpu_custom_call.1} parent=35 // pred_fallthru
          _
      $region36: #{tpu_custom_call.1} parent=5 // pred_fallthru
        _
    $region6: #{tpu_custom_call.1} parent=1 // loop_footer
      %s15 = sadd.s32 1, %s11
    $region7: #{tpu_custom_call.1} parent=1 // loop_footer_branch
      %10 = sbr.rel target = $region3
    $region8: #{tpu_custom_call.1} parent=1 // loop_exit
      _
    %537 = vsyncpa [#allocation3], 1
    %s538 = scalar_lea.sflag [#allocation3], 1
    %539 = vsyncpa %s538, 1

</llo_original>
